<compile_context>
chip_gen: v5e
topology: v5e:2x2
jax: 0.10.0
libtpu: 0.0.40
codegen_flags: <defaults>
</compile_context>

<pallas_src>
import functools

import jax
import jax.numpy as jnp
from jax.experimental import pallas as pl
from jax.experimental.pallas import tpu as pltpu

_MIB = 1024 * 1024


def _attention_dot_kernel(dec_ref, enc_ref, ct_ref, alpha_ref, *,
                          scores_on_mxu, ct_on_mxu):
    # dec_ref:   (BB, H)     decoder hidden state rows (native dtype)
    # enc_ref:   (BB, T, H)  encoder outputs           (native dtype)
    # ct_ref:    (BB, H)     context vector output (lane-dense over H)
    # alpha_ref: (BB, T)     attention weights output (lane-dense over T)
    enc = enc_ref[...]          # keep native dtype; no (BB,T,H) f32 copy
    dec = dec_ref[...]

    # ---- scores[b, t] = <enc[b, t, :], dec[b, :]> --------------------------
    if scores_on_mxu:
        # 'bqh,bth->bqt' batched matmul (q == 1) on the MXU, f32 accumulate
        scores = jax.lax.dot_general(
            dec.astype(enc.dtype)[:, None, :], enc,
            dimension_numbers=(((2,), (2,)), ((0,), (0,))),
            preferred_element_type=jnp.float32,
        )[:, 0, :]                                            # (BB, T) f32
    else:
        # tiny contracted dim: VPU broadcast-multiply + lane reduce
        scores = jnp.sum(
            enc.astype(jnp.float32) * dec.astype(jnp.float32)[:, None, :],
            axis=-1)                                          # (BB, T) f32

    # ---- numerically stable softmax along T (lane axis) --------------------
    m = jnp.max(scores, axis=-1, keepdims=True)               # (BB, 1)
    p = jnp.exp(scores - m)                                   # (BB, T)
    denom = jnp.sum(p, axis=-1, keepdims=True)                # (BB, 1)
    r = pl.reciprocal(denom, approx=True)                     # EUP vrcp (free slot)
    r = r * (2.0 - denom * r)                                 # Newton step -> f32 accuracy
    alpha = p * r                                             # (BB, T) f32

    # ---- c_t[b, :] = sum_t alpha[b, t] * enc[b, t, :] -----------------------
    if ct_on_mxu:
        # 'bqt,bth->bqh' batched matmul (q == 1); alpha cast DOWN to enc dtype
        ct = jax.lax.dot_general(
            alpha.astype(enc.dtype)[:, None, :], enc,
            dimension_numbers=(((2,), (1,)), ((0,), (0,))),
            preferred_element_type=jnp.float32,
        )[:, 0, :]                                            # (BB, H) f32
    else:
        ct = jnp.sum(alpha[:, :, None] * enc.astype(jnp.float32), axis=1)

    ct_ref[...] = ct.astype(ct_ref.dtype)
    alpha_ref[...] = alpha.astype(alpha_ref.dtype)


def _vmem_budget_and_limit():
    """Per-generation VMEM sizing: ~75% of physical VMEM, capped at 96 MiB.

    v5e/v6e (128 MiB physical) -> 96 MiB scoped limit; v7x (64 MiB per TC)
    -> 48 MiB. Falls back to a conservative 48 MiB if the query fails.
    """
    try:
        cap = int(pltpu.get_tpu_info().vmem_capacity_bytes)
    except Exception:  # older jax / non-TPU tracing
        cap = 64 * _MIB
    limit = max(32 * _MIB, min((cap * 3) // 4, 96 * _MIB))
    budget = (limit * 7) // 8            # headroom for Mosaic internal scratch
    return budget, limit


def _choose_batch_block(B, T, H, enc_itemsize, dec_itemsize, out_itemsize,
                        scores_on_mxu, ct_on_mxu, vmem_budget_bytes):
    """Largest sublane-aligned batch block whose working set fits the budget."""
    per_b = 2 * enc_itemsize * T * H          # double-buffered encoder tile (dominant)
    per_b += 2 * dec_itemsize * H             # double-buffered decoder rows
    per_b += 2 * out_itemsize * (T + H)       # double-buffered outputs
    per_b += 4 * 4 * T + 4 * H                # f32 scores / p / alpha rows + ct
    if not scores_on_mxu:
        per_b += 4 * T * H                    # f32 broadcast temp on VPU scores path
    if not ct_on_mxu:
        per_b += 4 * T * H                    # f32 broadcast temp on VPU context path

    bb = int(vmem_budget_bytes // max(per_b, 1))
    bb = max(bb, 1)
    if bb >= B:
        bb = B
    else:
        bb = max(8, (bb // 8) * 8)            # sublane-aligned partial blocks
        bb = min(bb, B)

    if B >= 64:
        # Keep >= ~8 grid steps: feeds both v7x TensorCores via the 'parallel'
        # axis and keeps the pipeline in steady state; per-step overhead
        # (~0.35us) is noise at this size on single-TC chips.
        cap = ((((B + 7) // 8) + 7) // 8) * 8
        bb = min(bb, max(cap, 8))
    return bb


def attention_dot(decoder_hidden_state, encoder_output, *, return_alpha_3d=True):
    """
    decoder_hidden_state: [1, B, H]   (LSTM h_n layout)
    encoder_output:       [B, T, H]   (batch_first LSTM output)
    returns: (c_t [B, H], alpha [B, T, 1])  -- matches the PyTorch module.
    Set return_alpha_3d=False to get lane-dense alpha [B, T] and skip the
    (real-copy) relayout to a trailing singleton dim.
    """
    B, T, H = encoder_output.shape
    dec = jnp.reshape(decoder_hidden_state, (B, H))     # torch.reshape -> [B,1,H], kept 2-D
    out_dtype = jnp.result_type(dec.dtype, encoder_output.dtype)

    # MXU whenever the *contracted* dim fills its tiles; tiny dims stay on VPU.
    scores_on_mxu = H >= 128
    ct_on_mxu = T >= 128

    vmem_budget, vmem_limit = _vmem_budget_and_limit()
    BB = _choose_batch_block(
        B, T, H,
        jnp.dtype(encoder_output.dtype).itemsize,
        jnp.dtype(dec.dtype).itemsize,
        jnp.dtype(out_dtype).itemsize,
        scores_on_mxu, ct_on_mxu, vmem_budget)
    grid = ((B + BB - 1) // BB,)

    io_bytes = (B * T * H * jnp.dtype(encoder_output.dtype).itemsize
                + B * H * jnp.dtype(dec.dtype).itemsize
                + B * (T + H) * jnp.dtype(out_dtype).itemsize)
    cost = pl.CostEstimate(flops=4 * B * T * H,
                           transcendentals=B * T + B,
                           bytes_accessed=io_bytes)

    kernel = functools.partial(_attention_dot_kernel,
                               scores_on_mxu=scores_on_mxu,
                               ct_on_mxu=ct_on_mxu)

    c_t, alpha2d = pl.pallas_call(
        kernel,
        out_shape=(
            jax.ShapeDtypeStruct((B, H), out_dtype),
            jax.ShapeDtypeStruct((B, T), out_dtype),     # lane-dense alpha
        ),
        grid_spec=pltpu.PrefetchScalarGridSpec(
            num_scalar_prefetch=0,
            grid=grid,
            in_specs=[
                pl.BlockSpec((BB, H), lambda i: (i, 0)),
                pl.BlockSpec((BB, T, H), lambda i: (i, 0, 0)),
            ],
            out_specs=[
                pl.BlockSpec((BB, H), lambda i: (i, 0)),
                pl.BlockSpec((BB, T), lambda i: (i, 0)),
            ],
        ),
        compiler_params=pltpu.CompilerParams(
            dimension_semantics=("parallel",),
            vmem_limit_bytes=vmem_limit,
        ),
        cost_estimate=cost,
    )(dec, encoder_output)

    if not return_alpha_3d:
        return c_t, alpha2d
    # The PyTorch module returns alpha as [B, T, 1]; this is a real relayout
    # (lane-dense -> last-dim-1) done outside the kernel for interface parity.
    return c_t, alpha2d[:, :, None]


def _reference(decoder_hidden_state, encoder_output):
    B, T, H = encoder_output.shape
    dec = jnp.reshape(decoder_hidden_state, (B, 1, H))
    scores = jnp.matmul(encoder_output, jnp.swapaxes(dec, 1, 2))  # [B, T, 1]
    alpha = jax.nn.softmax(scores, axis=1)
    c_t = jnp.sum(alpha * encoder_output, axis=1)
    return c_t, alpha


if __name__ == "__main__":
    key = jax.random.PRNGKey(0)
    k1, k2, k3, k4 = jax.random.split(key, 4)

    # --- small f32 case (VPU path), matches the module's typical LSTM shapes
    B, T, H = 2, 8, 32
    dec_in = jax.random.normal(k1, (1, B, H), dtype=jnp.float32)   # [num_layers=1, B, H]
    enc_in = jax.random.normal(k2, (B, T, H), dtype=jnp.float32)

    c_t, alpha = attention_dot(dec_in, enc_in)
    jax.block_until_ready((c_t, alpha))

    c_ref, a_ref = _reference(dec_in, enc_in)
    assert c_t.shape == (B, H) and alpha.shape == (B, T, 1)
    assert jnp.allclose(c_t, c_ref, atol=1e-4, rtol=1e-4)
    assert jnp.allclose(alpha, a_ref, atol=1e-4, rtol=1e-4)

    # --- bf16 case exercising the native-dtype MXU path (T, H >= 128)
    B2, T2, H2 = 4, 128, 128
    dec2 = jax.random.normal(k3, (1, B2, H2), dtype=jnp.bfloat16)
    enc2 = jax.random.normal(k4, (B2, T2, H2), dtype=jnp.bfloat16)

    c_t2, alpha2 = attention_dot(dec2, enc2)
    jax.block_until_ready((c_t2, alpha2))

    c_ref2, a_ref2 = _reference(dec2.astype(jnp.float32), enc2.astype(jnp.float32))
    assert c_t2.shape == (B2, H2) and alpha2.shape == (B2, T2, 1)
    assert jnp.allclose(c_t2.astype(jnp.float32), c_ref2, atol=2e-2, rtol=2e-2)
    assert jnp.allclose(alpha2.astype(jnp.float32), a_ref2, atol=2e-2, rtol=2e-2)

    print("KERNEL_OK")
</pallas_src>

<mosaic_0001>
module attributes {stable_mosaic.version = 11 : i64} {
  func.func @_attention_dot_kernel(%arg0: i32, %arg1: memref<2x32xf32, #tpu.memory_space<vmem>>, %arg2: memref<2x8x32xf32, #tpu.memory_space<vmem>>, %arg3: memref<2x32xf32, #tpu.memory_space<vmem>>, %arg4: memref<2x8xf32, #tpu.memory_space<vmem>>) attributes {dimension_semantics = [#tpu.dimension_semantics<parallel>], iteration_bounds = array<i64: 1>, scalar_prefetch = 0 : i64, scratch_operands = 0 : i64, tpu.core_type = #tpu.core_type<tc>, window_params = [{transform_indices = @transform_0, window_bounds = array<i64: 2, 32>}, {transform_indices = @transform_1, window_bounds = array<i64: 2, 8, 32>}, {transform_indices = @transform_2, window_bounds = array<i64: 2, 32>}, {transform_indices = @transform_3, window_bounds = array<i64: 2, 8>}]} {
    %c0 = arith.constant 0 : index
    %c0_0 = arith.constant 0 : index
    %c0_1 = arith.constant 0 : index
    %0 = vector.load %arg2[%c0, %c0_0, %c0_1] : memref<2x8x32xf32, #tpu.memory_space<vmem>>, vector<2x8x32xf32>
    %c0_2 = arith.constant 0 : index
    %c0_3 = arith.constant 0 : index
    %1 = vector.load %arg1[%c0_2, %c0_3] : memref<2x32xf32, #tpu.memory_space<vmem>>, vector<2x32xf32>
    %2 = vector.shape_cast %1 : vector<2x32xf32> to vector<2x1x32xf32>
    %3 = vector.broadcast %2 : vector<2x1x32xf32> to vector<2x8x32xf32>
    %4 = arith.mulf %0, %3 : vector<2x8x32xf32>
    %cst = arith.constant dense<0.000000e+00> : vector<2x8xf32>
    %5 = vector.multi_reduction <add>, %4, %cst [2] : vector<2x8x32xf32> to vector<2x8xf32>
    %cst_4 = arith.constant dense<0xFF800000> : vector<2xf32>
    %6 = vector.multi_reduction <maximumf>, %5, %cst_4 [1] : vector<2x8xf32> to vector<2xf32>
    %7 = vector.shape_cast %6 : vector<2xf32> to vector<2x1xf32>
    %8 = vector.broadcast %7 : vector<2x1xf32> to vector<2x8xf32>
    %9 = arith.subf %5, %8 : vector<2x8xf32>
    %10 = math.exp %9 : vector<2x8xf32>
    %cst_5 = arith.constant dense<0.000000e+00> : vector<2xf32>
    %11 = vector.multi_reduction <add>, %10, %cst_5 [1] : vector<2x8xf32> to vector<2xf32>
    %12 = vector.shape_cast %11 : vector<2xf32> to vector<2x1xf32>
    %13 = tpu.reciprocal %12 {approx = true} : vector<2x1xf32> -> vector<2x1xf32>
    %14 = arith.mulf %12, %13 : vector<2x1xf32>
    %cst_6 = arith.constant 2.000000e+00 : f32
    %15 = vector.broadcast %cst_6 : f32 to vector<2x1xf32>
    %16 = arith.subf %15, %14 : vector<2x1xf32>
    %17 = arith.mulf %13, %16 : vector<2x1xf32>
    %18 = vector.broadcast %17 : vector<2x1xf32> to vector<2x8xf32>
    %19 = arith.mulf %10, %18 : vector<2x8xf32>
    %20 = vector.shape_cast %19 : vector<2x8xf32> to vector<2x8x1xf32>
    %21 = vector.broadcast %20 : vector<2x8x1xf32> to vector<2x8x32xf32>
    %22 = arith.mulf %21, %0 : vector<2x8x32xf32>
    %cst_7 = arith.constant dense<0.000000e+00> : vector<2x32xf32>
    %23 = vector.multi_reduction <add>, %22, %cst_7 [1] : vector<2x8x32xf32> to vector<2x32xf32>
    %c0_8 = arith.constant 0 : index
    %c0_9 = arith.constant 0 : index
    %24 = vector.load %arg3[%c0_8, %c0_9] : memref<2x32xf32, #tpu.memory_space<vmem>>, vector<2x32xf32>
    tpu.vector_store %arg3[%c0_8, %c0_9], %23 {strides = array<i32>} : memref<2x32xf32, #tpu.memory_space<vmem>>, vector<2x32xf32>,
    %c0_10 = arith.constant 0 : index
    %c0_11 = arith.constant 0 : index
    %25 = vector.load %arg4[%c0_10, %c0_11] : memref<2x8xf32, #tpu.memory_space<vmem>>, vector<2x8xf32>
    tpu.vector_store %arg4[%c0_10, %c0_11], %19 {strides = array<i32>} : memref<2x8xf32, #tpu.memory_space<vmem>>, vector<2x8xf32>,
    return
  }
  func.func @transform_0(%arg0: i32) -> (i32, i32) {
    %c0_i32 = arith.constant 0 : i32
    %c0_i32_0 = arith.constant 0 : i32
    return %arg0, %c0_i32 : i32, i32
  }
  func.func @transform_1(%arg0: i32) -> (i32, i32, i32) {
    %c0_i32 = arith.constant 0 : i32
    %c0_i32_0 = arith.constant 0 : i32
    %c0_i32_1 = arith.constant 0 : i32
    return %arg0, %c0_i32, %c0_i32_0 : i32, i32, i32
  }
  func.func @transform_2(%arg0: i32) -> (i32, i32) {
    %c0_i32 = arith.constant 0 : i32
    %c0_i32_0 = arith.constant 0 : i32
    return %arg0, %c0_i32 : i32, i32
  }
  func.func @transform_3(%arg0: i32) -> (i32, i32) {
    %c0_i32 = arith.constant 0 : i32
    %c0_i32_0 = arith.constant 0 : i32
    return %arg0, %c0_i32 : i32, i32
  }
}

</mosaic_0001>

<llo_original>
// kernel: tpu_custom_call.1
$region0: #{tpu_custom_call.1}
  #allocation0 [shape = 'u32[]', space=smem, size = 0x4, offset = 0x4, fixed_abs, tag = 'smem constant byte address 0x4 - core index']
  #allocation1 [shape = 'u32[72,128]{1,0:T(1,128)}', space=vmem, size = 0x9000, scoped, tag = 'internal scratch']
  %s0 = inlined_call_operand.hbm [shape: f32[2,32], index: 0, kind: input, shape index: {}]
  %s1 = inlined_call_operand.hbm [shape: f32[2,8,32], index: 1, kind: input, shape index: {}]
  %s2 = inlined_call_operand.hbm [shape: f32[2,32], index: 2, kind: output, shape index: {0}]
  %s3 = inlined_call_operand.hbm [shape: f32[2,8], index: 3, kind: output, shape index: {1}]
  %4 = xla_tuple %s2, %s3
  %s5 = sld [smem:[#allocation0]]
  $region34: #{tpu_custom_call.1} parent=0
    _
  %s7 = ssub.s32 1, %s5
  %s8 = scalar_select 0, %s7, %s5
  $region1: #{tpu_custom_call.1} parent=0
    #allocation2 [shape = 'u8[1024]{0}', space=vmem, size = 0x400, scoped, tag = 'input window, operand 0, single buffered']
    #allocation3 [shape = 's32[1]{0}', space=sflag, size = 0x4, scoped, tag = 'scoped memory for tpu_custom_call.1']
    #allocation4 [shape = 's32[1]{0}', space=sflag, size = 0x4, scoped, tag = 'scoped memory for tpu_custom_call.1']
    #allocation5 [shape = 'u8[8192]{0}', space=vmem, size = 0x2000, scoped, tag = 'input window, operand 1, single buffered']
    #allocation6 [shape = 's32[1]{0}', space=sflag, size = 0x4, scoped, tag = 'scoped memory for tpu_custom_call.1']
    #allocation7 [shape = 'u8[1024]{0}', space=vmem, size = 0x400, scoped, tag = 'output window, operand 0, single buffered']
    #allocation8 [shape = 'u8[1024]{0}', space=vmem, size = 0x400, scoped, tag = 'output window, operand 1, single buffered']
    #allocation9 [shape = 's32[1]{0}', space=sflag, size = 0x4, scoped, tag = 'scoped memory for tpu_custom_call.1']
    %9 = vsyncpa [#allocation3], 0
    %10 = vsyncpa [#allocation6], 0
    %11 = vsyncpa [#allocation4], 0
    %12 = vsyncpa [#allocation9], 0
    // Predicated region
    $region2: #{tpu_custom_call.1} parent=1 // pred_check
      _
    $region3: #{tpu_custom_call.1} parent=1 // pred_check_branch
      %14 = sbr.rel (0) target = $region5
    $region4: #{tpu_custom_call.1} parent=1 // pred_region
      %16 = vsyncadd [#allocation3], 0
      %s18 = sshll.u32 %s0, 4
      %s19 = int_to_ptr.hbm [resolvable:$true] %s18
      %s20 = sshll.u32 [#allocation2], 4
      %s21 = int_to_ptr.vmem [resolvable:$true] %s20
      %23 = dma.hbm_to_vmem [thread:$0]  %s19, 32, %s21, [#allocation3]
    $region5: #{tpu_custom_call.1} parent=1 // pred_fallthru
      _
    // Predicated region
    $region6: #{tpu_custom_call.1} parent=1 // pred_check
      _
    $region7: #{tpu_custom_call.1} parent=1 // pred_check_branch
      %25 = sbr.rel (0) target = $region9
    $region8: #{tpu_custom_call.1} parent=1 // pred_region
      %27 = vsyncadd [#allocation6], 0
      %s28 = sshll.u32 %s1, 4
      %s29 = int_to_ptr.hbm [resolvable:$true] %s28
      %s30 = sshll.u32 [#allocation5], 4
      %s31 = int_to_ptr.vmem [resolvable:$true] %s30
      %36 = dma.hbm_to_vmem [thread:$0]  %s29, 256, %s31, [#allocation6], 128, 128, 8
    $region9: #{tpu_custom_call.1} parent=1 // pred_fallthru
      _
    // Predicated region
    $region10: #{tpu_custom_call.1} parent=1 // pred_check
      _
    $region11: #{tpu_custom_call.1} parent=1 // pred_check_branch
      %38 = sbr.rel (0) target = $region13
    $region12: #{tpu_custom_call.1} parent=1 // pred_region
      %40 = dma.done [#allocation3], 32
    $region13: #{tpu_custom_call.1} parent=1 // pred_fallthru
      _
    // Predicated region
    $region14: #{tpu_custom_call.1} parent=1 // pred_check
      _
    $region15: #{tpu_custom_call.1} parent=1 // pred_check_branch
      %42 = sbr.rel (0) target = $region17
    $region16: #{tpu_custom_call.1} parent=1 // pred_region
      %44 = dma.done [#allocation6], 256
    $region17: #{tpu_custom_call.1} parent=1 // pred_fallthru
      _
    %v45 = vld [vmem:[#allocation5] sm:$0xff]
    %v46 = vld [vmem:[#allocation5 + $0x8] sm:$0xff]
    %v47 = vld [vmem:[#allocation2] sm:$0x3]
    %v49 = vrot.slane %v47, 1
    %v50 = vperm.slane %v47, 0
    %v51 = vperm.slane %v49, 0
    %v54 = vmul.f32 %v45, %v50
    %v55 = vmul.f32 %v46, %v51
    %vm56 = vcmask 261120
    %v57 = vsel %vm56, %v54, 0.0
    %58 = vadd.xlane.f32.xlu0 %v57
    %v59 = vpop.xlane.xlu0 %58
    %v60 = vsel %vm56, %v55, 0.0
    %61 = vadd.xlane.f32.xlu0 %v60
    %v62 = vpop.xlane.xlu0 %61
    %v65 = vlaneseq
    %v66 = vand.u32 %v65, 127
    %v67 = vperm.slane %v59, %v66
    %v68 = vperm.slane %v62, %v66
    %vm69 = vcmask 1041409
    %v70 = vsel %vm69, %v68, %v67
    %vm72 = vcmask 58368
    %v73 = vsel %vm72, %v70, -inf
    %74 = vmax.xlane.f32.xlu0 %v73
    %v75 = vpop.xlane.xlu0 %74
    %v77 = vperm.slane %v75, 0
    %v78 = vperm.slane %v75, 1
    %v81 = vsub.f32 %v59, %v77
    %v82 = vsub.f32 %v62, %v78
    %v83 = vmul.f32 %v81, 1.442695
    %v84 = vpow.pop %v83
    %v85 = vmul.f32 %v82, 1.442695
    %v86 = vpow.pop %v85
    %89 = vset.pattern.permute.xlu0 0
    %90 = vperm.xlu0 %89, %v84
    %v91 = vpop.permute.xlu0 %90
    %92 = vset.pattern.permute.xlu0 0
    %93 = vperm.xlu0 %92, %v86
    %v94 = vpop.permute.xlu0 %93
    %v95 = vperm.slane %v91, %v66
    %v96 = vperm.slane %v94, %v66
    %v97 = vsel %vm69, %v96, %v95
    %v99 = vsel %vm72, %v97, 0.0
    %100 = vadd.xlane.f32.xlu0 %v99
    %v101 = vpop.xlane.xlu0 %100
    %v102 = vrcp.pop %v101
    %v103 = vmul.f32 %v101, %v102
    %v104 = vsub.f32 2.0, %v103
    %v105 = vmul.f32 %v102, %v104
    %v107 = vperm.slane %v105, 0
    %v108 = vperm.slane %v105, 1
    %v111 = vmul.f32 %v84, %v107
    %v112 = vmul.f32 %v86, %v108
    %114 = vset.pattern.permute.xlu0 0
    %115 = vperm.xlu0 %114, %v111
    %v116 = vpop.permute.xlu0 %115
    %119 = vset.pattern.permute.xlu0 0
    %120 = vperm.xlu0 %119, %v112
    %v121 = vpop.permute.xlu0 %120
    %v123 = vmul.f32 %v116, %v45
    %v124 = vmul.f32 %v121, %v46
    %v125 = vsel %vm56, %v123, 0.0
    %v126 = vrot.slane %v125, 4
    %v127 = vadd.f32 %v125, %v126
    %v128 = vrot.slane %v127, 2
    %v129 = vadd.f32 %v127, %v128
    %v130 = vrot.slane %v129, 1
    %v131 = vadd.f32 %v129, %v130
    %v132 = vsel %vm56, %v124, 0.0
    %v133 = vrot.slane %v132, 4
    %v134 = vadd.f32 %v132, %v133
    %v135 = vrot.slane %v134, 2
    %v136 = vadd.f32 %v134, %v135
    %v137 = vrot.slane %v136, 1
    %v138 = vadd.f32 %v136, %v137
    %v141 = vsel %vm69, %v138, %v131
    %vm143 = vcmask 254976
    %144 = vst.msk [vmem:[#allocation7] sm:$0x3] %vm143, %v141
    %v145 = vperm.slane %v116, %v66
    %v146 = vperm.slane %v121, %v66
    %v147 = vsel %vm69, %v146, %v145
    %149 = vst.msk [vmem:[#allocation8] sm:$0x3] %vm72, %v147
    // Predicated region
    $region18: #{tpu_custom_call.1} parent=1 // pred_check
      _
    $region19: #{tpu_custom_call.1} parent=1 // pred_check_branch
      %151 = sbr.rel (0) target = $region21
    $region20: #{tpu_custom_call.1} parent=1 // pred_region
      %153 = vsyncadd [#allocation4], 0
      %s155 = sshll.u32 [#allocation7], 4
      %s156 = int_to_ptr.vmem [resolvable:$true] %s155
      %s157 = sshll.u32 %s2, 4
      %s158 = int_to_ptr.hbm [resolvable:$true] %s157
      %160 = dma.vmem_to_hbm [thread:$0]  %s156, 32, %s158, [#allocation4]
    $region21: #{tpu_custom_call.1} parent=1 // pred_fallthru
      _
    // Predicated region
    $region22: #{tpu_custom_call.1} parent=1 // pred_check
      _
    $region23: #{tpu_custom_call.1} parent=1 // pred_check_branch
      %162 = sbr.rel (0) target = $region25
    $region24: #{tpu_custom_call.1} parent=1 // pred_region
      %164 = vsyncadd [#allocation9], 0
      %s166 = sshll.u32 [#allocation8], 4
      %s167 = int_to_ptr.vmem [resolvable:$true] %s166
      %s168 = sshll.u32 %s3, 4
      %s169 = int_to_ptr.hbm [resolvable:$true] %s168
      %171 = dma.vmem_to_hbm [thread:$0]  %s167, 32, %s169, [#allocation9]
    $region25: #{tpu_custom_call.1} parent=1 // pred_fallthru
      _
    // Predicated region
    $region26: #{tpu_custom_call.1} parent=1 // pred_check
      _
    $region27: #{tpu_custom_call.1} parent=1 // pred_check_branch
      %173 = sbr.rel (0) target = $region29
    $region28: #{tpu_custom_call.1} parent=1 // pred_region
      %175 = dma.done [#allocation4], 32
    $region29: #{tpu_custom_call.1} parent=1 // pred_fallthru
      _
    // Predicated region
    $region30: #{tpu_custom_call.1} parent=1 // pred_check
      _
    $region31: #{tpu_custom_call.1} parent=1 // pred_check_branch
      %177 = sbr.rel (0) target = $region33
    $region32: #{tpu_custom_call.1} parent=1 // pred_region
      %179 = dma.done [#allocation9], 32
    $region33: #{tpu_custom_call.1} parent=1 // pred_fallthru
      _
    %180 = vsyncpa [#allocation3], 1
    %181 = vsyncpa [#allocation6], 1
    %182 = vsyncpa [#allocation4], 1
    %183 = vsyncpa [#allocation9], 1

</llo_original>
